<compile_context>
chip_gen: v5e
topology: v5e:2x2
jax: 0.10.0
libtpu: 0.0.40
codegen_flags: <defaults>
</compile_context>

<pallas_src>
import jax
import jax.numpy as jnp
from jax import lax
from jax.experimental import pallas as pl
from jax.experimental.pallas import tpu as pltpu

POOL_SIZES = [5, 9, 13]   # module default; forward concatenates [p13, p9, p5, x]


def _spp_kernel(x_ref, o_ref, padw_ref, padh_ref):
    x = x_ref[0]                                  # (TC, H, W)
    TC, H, W = x.shape
    dt = x.dtype
    neg = jnp.asarray(-jnp.inf, dt)

    # Identity branch first (pure copy).
    o_ref[0, 3, :, :, :] = x

    # -inf halo of the padded scratch buffers (interior rewritten every stage,
    # halo never touched afterwards).
    padw_ref[:, :, 0:2] = jnp.full((TC, H, 2), neg, dt)
    padw_ref[:, :, W + 2:W + 4] = jnp.full((TC, H, 2), neg, dt)
    padh_ref[:, 0:2, :] = jnp.full((TC, 2, W), neg, dt)
    padh_ref[:, H + 2:H + 4, :] = jnp.full((TC, 2, W), neg, dt)

    def pool5(v):
        # Separable 5x5, stride 1, pad 2 (== torch.nn.MaxPool2d(5, 1, 2)).
        padw_ref[:, :, 2:2 + W] = v               # W pass
        mw = padw_ref[:, :, 0:W]
        for d in range(1, 5):
            mw = jnp.maximum(mw, padw_ref[:, :, d:d + W])
        padh_ref[:, 2:2 + H, :] = mw              # H pass
        m = padh_ref[:, 0:H, :]
        for d in range(1, 5):
            m = jnp.maximum(m, padh_ref[:, d:d + H, :])
        return m

    # SPPF cascade (exact for -inf "same" padding).
    p5 = pool5(x)
    o_ref[0, 2, :, :, :] = p5
    p9 = pool5(p5)
    o_ref[0, 1, :, :, :] = p9
    p13 = pool5(p9)
    o_ref[0, 0, :, :, :] = p13


def _choose_channel_tile(C, H, W, itemsize, budget_bytes=20 << 20):
    """Largest divisor of C whose working set stays under `budget_bytes`.

    Live VMEM per grid step ~= (2 in + 8 out double-buffered + ~4 scratch/temp)
    channel planes of H*W elements -> ~14 planes per tiled channel.
    """
    per_chan = 14 * H * W * itemsize
    tc = int(max(1, min(C, budget_bytes // per_chan)))
    while C % tc:
        tc -= 1
    return tc


def spatial_pyramid_pooling(x, channel_tile=None):
    """x: (N, C, H, W) float -> (N, 4*C, H, W); channels = [p13, p9, p5, x]."""
    if not jnp.issubdtype(x.dtype, jnp.floating):
        raise TypeError("spatial_pyramid_pooling: floating dtypes only")
    N, C, H, W = x.shape
    itemsize = jnp.dtype(x.dtype).itemsize
    tc = channel_tile or _choose_channel_tile(C, H, W, itemsize)
    assert C % tc == 0

    out = pl.pallas_call(
        _spp_kernel,
        out_shape=jax.ShapeDtypeStruct((N, 4, C, H, W), x.dtype),
        grid_spec=pltpu.PrefetchScalarGridSpec(
            num_scalar_prefetch=0,
            grid=(N, C // tc),
            in_specs=[pl.BlockSpec((1, tc, H, W), lambda n, c: (n, c, 0, 0))],
            out_specs=pl.BlockSpec((1, 4, tc, H, W),
                                   lambda n, c: (n, 0, c, 0, 0)),
            scratch_shapes=[
                pltpu.VMEM((tc, H, W + 4), x.dtype),   # W-pass halo buffer
                pltpu.VMEM((tc, H + 4, W), x.dtype),   # H-pass halo buffer
            ],
        ),
        compiler_params=pltpu.CompilerParams(
            dimension_semantics=("parallel", "parallel"),
            vmem_limit_bytes=32 << 20,
        ),
    )(x)
    # (N, 4, C, H, W) -> (N, 4C, H, W): contiguous reshape, preserves the
    # [pool13, pool9, pool5, x] concat order along channels.
    return out.reshape(N, 4 * C, H, W)


def _reference_spp(x):
    """Plain-JAX reference matching torch.nn.MaxPool2d(k, 1, k//2) semantics."""
    feats = []
    for k in POOL_SIZES[::-1]:
        p = k // 2
        pooled = lax.reduce_window(
            x, -jnp.inf, lax.max,
            window_dimensions=(1, 1, k, k),
            window_strides=(1, 1, 1, 1),
            padding=((0, 0), (0, 0), (p, p), (p, p)),
        )
        feats.append(pooled)
    return jnp.concatenate(feats + [x], axis=1)


if __name__ == "__main__":
    key = jax.random.PRNGKey(0)
    x = jax.random.normal(key, (2, 4, 16, 16), dtype=jnp.float32)

    out = jax.block_until_ready(spatial_pyramid_pooling(x))
    ref = _reference_spp(x)
    assert out.shape == (2, 16, 16, 16), out.shape
    assert jnp.allclose(out, ref, atol=1e-6), "mismatch vs reference"

    # Also exercise the channel-tiled path (grid with >1 channel block).
    x2 = jax.random.normal(jax.random.PRNGKey(1), (1, 8, 16, 16), jnp.float32)
    out2 = jax.block_until_ready(spatial_pyramid_pooling(x2, channel_tile=2))
    assert jnp.allclose(out2, _reference_spp(x2), atol=1e-6), "tiled mismatch"

    print("KERNEL_OK")
</pallas_src>

<mosaic_0001>
module attributes {stable_mosaic.version = 11 : i64} {
  func.func @_spp_kernel(%arg0: i32, %arg1: i32, %arg2: memref<1x4x16x16xf32, #tpu.memory_space<vmem>>, %arg3: memref<1x4x4x16x16xf32, #tpu.memory_space<vmem>>, %arg4: memref<4x16x20xf32, #tpu.memory_space<vmem>>, %arg5: memref<4x20x16xf32, #tpu.memory_space<vmem>>) attributes {dimension_semantics = [#tpu.dimension_semantics<parallel>, #tpu.dimension_semantics<parallel>], iteration_bounds = array<i64: 2, 1>, scalar_prefetch = 0 : i64, scratch_operands = 2 : i64, tpu.core_type = #tpu.core_type<tc>, window_params = [{transform_indices = @transform_0, window_bounds = array<i64: 1, 4, 16, 16>}, {transform_indices = @transform_1, window_bounds = array<i64: 1, 4, 4, 16, 16>}]} {
    %c0 = arith.constant 0 : index
    %c0_0 = arith.constant 0 : index
    %c0_1 = arith.constant 0 : index
    %c0_2 = arith.constant 0 : index
    %0 = vector.load %arg2[%c0, %c0_0, %c0_1, %c0_2] : memref<1x4x16x16xf32, #tpu.memory_space<vmem>>, vector<1x4x16x16xf32>
    %1 = vector.shape_cast %0 : vector<1x4x16x16xf32> to vector<4x16x16xf32>
    %c0_3 = arith.constant 0 : index
    %c3 = arith.constant 3 : index
    %c0_4 = arith.constant 0 : index
    %c0_5 = arith.constant 0 : index
    %c0_6 = arith.constant 0 : index
    %2 = vector.load %arg3[%c0_3, %c3, %c0_4, %c0_5, %c0_6] : memref<1x4x4x16x16xf32, #tpu.memory_space<vmem>>, vector<1x1x4x16x16xf32>
    %3 = vector.shape_cast %2 : vector<1x1x4x16x16xf32> to vector<4x16x16xf32>
    %4 = vector.shape_cast %1 : vector<4x16x16xf32> to vector<1x1x4x16x16xf32>
    tpu.vector_store %arg3[%c0_3, %c3, %c0_4, %c0_5, %c0_6], %4 {strides = array<i32>} : memref<1x4x4x16x16xf32, #tpu.memory_space<vmem>>, vector<1x1x4x16x16xf32>,
    %cst = arith.constant 0xFF800000 : f32
    %5 = vector.broadcast %cst : f32 to vector<4x16x2xf32>
    %c0_7 = arith.constant 0 : index
    %c0_8 = arith.constant 0 : index
    %c0_9 = arith.constant 0 : index
    %6 = vector.load %arg4[%c0_7, %c0_8, %c0_9] : memref<4x16x20xf32, #tpu.memory_space<vmem>>, vector<4x16x2xf32>
    tpu.vector_store %arg4[%c0_7, %c0_8, %c0_9], %5 {strides = array<i32>} : memref<4x16x20xf32, #tpu.memory_space<vmem>>, vector<4x16x2xf32>,
    %cst_10 = arith.constant 0xFF800000 : f32
    %7 = vector.broadcast %cst_10 : f32 to vector<4x16x2xf32>
    %c0_11 = arith.constant 0 : index
    %c0_12 = arith.constant 0 : index
    %c18 = arith.constant 18 : index
    %8 = vector.load %arg4[%c0_11, %c0_12, %c18] : memref<4x16x20xf32, #tpu.memory_space<vmem>>, vector<4x16x2xf32>
    tpu.vector_store %arg4[%c0_11, %c0_12, %c18], %7 {strides = array<i32>} : memref<4x16x20xf32, #tpu.memory_space<vmem>>, vector<4x16x2xf32>,
    %cst_13 = arith.constant 0xFF800000 : f32
    %9 = vector.broadcast %cst_13 : f32 to vector<4x2x16xf32>
    %c0_14 = arith.constant 0 : index
    %c0_15 = arith.constant 0 : index
    %c0_16 = arith.constant 0 : index
    %10 = vector.load %arg5[%c0_14, %c0_15, %c0_16] : memref<4x20x16xf32, #tpu.memory_space<vmem>>, vector<4x2x16xf32>
    tpu.vector_store %arg5[%c0_14, %c0_15, %c0_16], %9 {strides = array<i32>} : memref<4x20x16xf32, #tpu.memory_space<vmem>>, vector<4x2x16xf32>,
    %cst_17 = arith.constant 0xFF800000 : f32
    %11 = vector.broadcast %cst_17 : f32 to vector<4x2x16xf32>
    %c0_18 = arith.constant 0 : index
    %c18_19 = arith.constant 18 : index
    %c0_20 = arith.constant 0 : index
    %12 = vector.load %arg5[%c0_18, %c18_19, %c0_20] : memref<4x20x16xf32, #tpu.memory_space<vmem>>, vector<4x2x16xf32>
    tpu.vector_store %arg5[%c0_18, %c18_19, %c0_20], %11 {strides = array<i32>} : memref<4x20x16xf32, #tpu.memory_space<vmem>>, vector<4x2x16xf32>,
    %c0_21 = arith.constant 0 : index
    %c0_22 = arith.constant 0 : index
    %c2 = arith.constant 2 : index
    %13 = vector.load %arg4[%c0_21, %c0_22, %c2] : memref<4x16x20xf32, #tpu.memory_space<vmem>>, vector<4x16x16xf32>
    tpu.vector_store %arg4[%c0_21, %c0_22, %c2], %1 {strides = array<i32>} : memref<4x16x20xf32, #tpu.memory_space<vmem>>, vector<4x16x16xf32>,
    %c0_23 = arith.constant 0 : index
    %c0_24 = arith.constant 0 : index
    %c0_25 = arith.constant 0 : index
    %14 = vector.load %arg4[%c0_23, %c0_24, %c0_25] : memref<4x16x20xf32, #tpu.memory_space<vmem>>, vector<4x16x16xf32>
    %c0_26 = arith.constant 0 : index
    %c0_27 = arith.constant 0 : index
    %c1 = arith.constant 1 : index
    %15 = vector.load %arg4[%c0_26, %c0_27, %c1] : memref<4x16x20xf32, #tpu.memory_space<vmem>>, vector<4x16x16xf32>
    %16 = arith.maximumf %14, %15 : vector<4x16x16xf32>
    %c0_28 = arith.constant 0 : index
    %c0_29 = arith.constant 0 : index
    %c2_30 = arith.constant 2 : index
    %17 = vector.load %arg4[%c0_28, %c0_29, %c2_30] : memref<4x16x20xf32, #tpu.memory_space<vmem>>, vector<4x16x16xf32>
    %18 = arith.maximumf %16, %17 : vector<4x16x16xf32>
    %c0_31 = arith.constant 0 : index
    %c0_32 = arith.constant 0 : index
    %c3_33 = arith.constant 3 : index
    %19 = vector.load %arg4[%c0_31, %c0_32, %c3_33] : memref<4x16x20xf32, #tpu.memory_space<vmem>>, vector<4x16x16xf32>
    %20 = arith.maximumf %18, %19 : vector<4x16x16xf32>
    %c0_34 = arith.constant 0 : index
    %c0_35 = arith.constant 0 : index
    %c4 = arith.constant 4 : index
    %21 = vector.load %arg4[%c0_34, %c0_35, %c4] : memref<4x16x20xf32, #tpu.memory_space<vmem>>, vector<4x16x16xf32>
    %22 = arith.maximumf %20, %21 : vector<4x16x16xf32>
    %c0_36 = arith.constant 0 : index
    %c2_37 = arith.constant 2 : index
    %c0_38 = arith.constant 0 : index
    %23 = vector.load %arg5[%c0_36, %c2_37, %c0_38] : memref<4x20x16xf32, #tpu.memory_space<vmem>>, vector<4x16x16xf32>
    tpu.vector_store %arg5[%c0_36, %c2_37, %c0_38], %22 {strides = array<i32>} : memref<4x20x16xf32, #tpu.memory_space<vmem>>, vector<4x16x16xf32>,
    %c0_39 = arith.constant 0 : index
    %c0_40 = arith.constant 0 : index
    %c0_41 = arith.constant 0 : index
    %24 = vector.load %arg5[%c0_39, %c0_40, %c0_41] : memref<4x20x16xf32, #tpu.memory_space<vmem>>, vector<4x16x16xf32>
    %c0_42 = arith.constant 0 : index
    %c1_43 = arith.constant 1 : index
    %c0_44 = arith.constant 0 : index
    %25 = vector.load %arg5[%c0_42, %c1_43, %c0_44] : memref<4x20x16xf32, #tpu.memory_space<vmem>>, vector<4x16x16xf32>
    %26 = arith.maximumf %24, %25 : vector<4x16x16xf32>
    %c0_45 = arith.constant 0 : index
    %c2_46 = arith.constant 2 : index
    %c0_47 = arith.constant 0 : index
    %27 = vector.load %arg5[%c0_45, %c2_46, %c0_47] : memref<4x20x16xf32, #tpu.memory_space<vmem>>, vector<4x16x16xf32>
    %28 = arith.maximumf %26, %27 : vector<4x16x16xf32>
    %c0_48 = arith.constant 0 : index
    %c3_49 = arith.constant 3 : index
    %c0_50 = arith.constant 0 : index
    %29 = vector.load %arg5[%c0_48, %c3_49, %c0_50] : memref<4x20x16xf32, #tpu.memory_space<vmem>>, vector<4x16x16xf32>
    %30 = arith.maximumf %28, %29 : vector<4x16x16xf32>
    %c0_51 = arith.constant 0 : index
    %c4_52 = arith.constant 4 : index
    %c0_53 = arith.constant 0 : index
    %31 = vector.load %arg5[%c0_51, %c4_52, %c0_53] : memref<4x20x16xf32, #tpu.memory_space<vmem>>, vector<4x16x16xf32>
    %32 = arith.maximumf %30, %31 : vector<4x16x16xf32>
    %c0_54 = arith.constant 0 : index
    %c2_55 = arith.constant 2 : index
    %c0_56 = arith.constant 0 : index
    %c0_57 = arith.constant 0 : index
    %c0_58 = arith.constant 0 : index
    %33 = vector.load %arg3[%c0_54, %c2_55, %c0_56, %c0_57, %c0_58] : memref<1x4x4x16x16xf32, #tpu.memory_space<vmem>>, vector<1x1x4x16x16xf32>
    %34 = vector.shape_cast %33 : vector<1x1x4x16x16xf32> to vector<4x16x16xf32>
    %35 = vector.shape_cast %32 : vector<4x16x16xf32> to vector<1x1x4x16x16xf32>
    tpu.vector_store %arg3[%c0_54, %c2_55, %c0_56, %c0_57, %c0_58], %35 {strides = array<i32>} : memref<1x4x4x16x16xf32, #tpu.memory_space<vmem>>, vector<1x1x4x16x16xf32>,
    %c0_59 = arith.constant 0 : index
    %c0_60 = arith.constant 0 : index
    %c2_61 = arith.constant 2 : index
    %36 = vector.load %arg4[%c0_59, %c0_60, %c2_61] : memref<4x16x20xf32, #tpu.memory_space<vmem>>, vector<4x16x16xf32>
    tpu.vector_store %arg4[%c0_59, %c0_60, %c2_61], %32 {strides = array<i32>} : memref<4x16x20xf32, #tpu.memory_space<vmem>>, vector<4x16x16xf32>,
    %c0_62 = arith.constant 0 : index
    %c0_63 = arith.constant 0 : index
    %c0_64 = arith.constant 0 : index
    %37 = vector.load %arg4[%c0_62, %c0_63, %c0_64] : memref<4x16x20xf32, #tpu.memory_space<vmem>>, vector<4x16x16xf32>
    %c0_65 = arith.constant 0 : index
    %c0_66 = arith.constant 0 : index
    %c1_67 = arith.constant 1 : index
    %38 = vector.load %arg4[%c0_65, %c0_66, %c1_67] : memref<4x16x20xf32, #tpu.memory_space<vmem>>, vector<4x16x16xf32>
    %39 = arith.maximumf %37, %38 : vector<4x16x16xf32>
    %c0_68 = arith.constant 0 : index
    %c0_69 = arith.constant 0 : index
    %c2_70 = arith.constant 2 : index
    %40 = vector.load %arg4[%c0_68, %c0_69, %c2_70] : memref<4x16x20xf32, #tpu.memory_space<vmem>>, vector<4x16x16xf32>
    %41 = arith.maximumf %39, %40 : vector<4x16x16xf32>
    %c0_71 = arith.constant 0 : index
    %c0_72 = arith.constant 0 : index
    %c3_73 = arith.constant 3 : index
    %42 = vector.load %arg4[%c0_71, %c0_72, %c3_73] : memref<4x16x20xf32, #tpu.memory_space<vmem>>, vector<4x16x16xf32>
    %43 = arith.maximumf %41, %42 : vector<4x16x16xf32>
    %c0_74 = arith.constant 0 : index
    %c0_75 = arith.constant 0 : index
    %c4_76 = arith.constant 4 : index
    %44 = vector.load %arg4[%c0_74, %c0_75, %c4_76] : memref<4x16x20xf32, #tpu.memory_space<vmem>>, vector<4x16x16xf32>
    %45 = arith.maximumf %43, %44 : vector<4x16x16xf32>
    %c0_77 = arith.constant 0 : index
    %c2_78 = arith.constant 2 : index
    %c0_79 = arith.constant 0 : index
    %46 = vector.load %arg5[%c0_77, %c2_78, %c0_79] : memref<4x20x16xf32, #tpu.memory_space<vmem>>, vector<4x16x16xf32>
    tpu.vector_store %arg5[%c0_77, %c2_78, %c0_79], %45 {strides = array<i32>} : memref<4x20x16xf32, #tpu.memory_space<vmem>>, vector<4x16x16xf32>,
    %c0_80 = arith.constant 0 : index
    %c0_81 = arith.constant 0 : index
    %c0_82 = arith.constant 0 : index
    %47 = vector.load %arg5[%c0_80, %c0_81, %c0_82] : memref<4x20x16xf32, #tpu.memory_space<vmem>>, vector<4x16x16xf32>
    %c0_83 = arith.constant 0 : index
    %c1_84 = arith.constant 1 : index
    %c0_85 = arith.constant 0 : index
    %48 = vector.load %arg5[%c0_83, %c1_84, %c0_85] : memref<4x20x16xf32, #tpu.memory_space<vmem>>, vector<4x16x16xf32>
    %49 = arith.maximumf %47, %48 : vector<4x16x16xf32>
    %c0_86 = arith.constant 0 : index
    %c2_87 = arith.constant 2 : index
    %c0_88 = arith.constant 0 : index
    %50 = vector.load %arg5[%c0_86, %c2_87, %c0_88] : memref<4x20x16xf32, #tpu.memory_space<vmem>>, vector<4x16x16xf32>
    %51 = arith.maximumf %49, %50 : vector<4x16x16xf32>
    %c0_89 = arith.constant 0 : index
    %c3_90 = arith.constant 3 : index
    %c0_91 = arith.constant 0 : index
    %52 = vector.load %arg5[%c0_89, %c3_90, %c0_91] : memref<4x20x16xf32, #tpu.memory_space<vmem>>, vector<4x16x16xf32>
    %53 = arith.maximumf %51, %52 : vector<4x16x16xf32>
    %c0_92 = arith.constant 0 : index
    %c4_93 = arith.constant 4 : index
    %c0_94 = arith.constant 0 : index
    %54 = vector.load %arg5[%c0_92, %c4_93, %c0_94] : memref<4x20x16xf32, #tpu.memory_space<vmem>>, vector<4x16x16xf32>
    %55 = arith.maximumf %53, %54 : vector<4x16x16xf32>
    %c0_95 = arith.constant 0 : index
    %c1_96 = arith.constant 1 : index
    %c0_97 = arith.constant 0 : index
    %c0_98 = arith.constant 0 : index
    %c0_99 = arith.constant 0 : index
    %56 = vector.load %arg3[%c0_95, %c1_96, %c0_97, %c0_98, %c0_99] : memref<1x4x4x16x16xf32, #tpu.memory_space<vmem>>, vector<1x1x4x16x16xf32>
    %57 = vector.shape_cast %56 : vector<1x1x4x16x16xf32> to vector<4x16x16xf32>
    %58 = vector.shape_cast %55 : vector<4x16x16xf32> to vector<1x1x4x16x16xf32>
    tpu.vector_store %arg3[%c0_95, %c1_96, %c0_97, %c0_98, %c0_99], %58 {strides = array<i32>} : memref<1x4x4x16x16xf32, #tpu.memory_space<vmem>>, vector<1x1x4x16x16xf32>,
    %c0_100 = arith.constant 0 : index
    %c0_101 = arith.constant 0 : index
    %c2_102 = arith.constant 2 : index
    %59 = vector.load %arg4[%c0_100, %c0_101, %c2_102] : memref<4x16x20xf32, #tpu.memory_space<vmem>>, vector<4x16x16xf32>
    tpu.vector_store %arg4[%c0_100, %c0_101, %c2_102], %55 {strides = array<i32>} : memref<4x16x20xf32, #tpu.memory_space<vmem>>, vector<4x16x16xf32>,
    %c0_103 = arith.constant 0 : index
    %c0_104 = arith.constant 0 : index
    %c0_105 = arith.constant 0 : index
    %60 = vector.load %arg4[%c0_103, %c0_104, %c0_105] : memref<4x16x20xf32, #tpu.memory_space<vmem>>, vector<4x16x16xf32>
    %c0_106 = arith.constant 0 : index
    %c0_107 = arith.constant 0 : index
    %c1_108 = arith.constant 1 : index
    %61 = vector.load %arg4[%c0_106, %c0_107, %c1_108] : memref<4x16x20xf32, #tpu.memory_space<vmem>>, vector<4x16x16xf32>
    %62 = arith.maximumf %60, %61 : vector<4x16x16xf32>
    %c0_109 = arith.constant 0 : index
    %c0_110 = arith.constant 0 : index
    %c2_111 = arith.constant 2 : index
    %63 = vector.load %arg4[%c0_109, %c0_110, %c2_111] : memref<4x16x20xf32, #tpu.memory_space<vmem>>, vector<4x16x16xf32>
    %64 = arith.maximumf %62, %63 : vector<4x16x16xf32>
    %c0_112 = arith.constant 0 : index
    %c0_113 = arith.constant 0 : index
    %c3_114 = arith.constant 3 : index
    %65 = vector.load %arg4[%c0_112, %c0_113, %c3_114] : memref<4x16x20xf32, #tpu.memory_space<vmem>>, vector<4x16x16xf32>
    %66 = arith.maximumf %64, %65 : vector<4x16x16xf32>
    %c0_115 = arith.constant 0 : index
    %c0_116 = arith.constant 0 : index
    %c4_117 = arith.constant 4 : index
    %67 = vector.load %arg4[%c0_115, %c0_116, %c4_117] : memref<4x16x20xf32, #tpu.memory_space<vmem>>, vector<4x16x16xf32>
    %68 = arith.maximumf %66, %67 : vector<4x16x16xf32>
    %c0_118 = arith.constant 0 : index
    %c2_119 = arith.constant 2 : index
    %c0_120 = arith.constant 0 : index
    %69 = vector.load %arg5[%c0_118, %c2_119, %c0_120] : memref<4x20x16xf32, #tpu.memory_space<vmem>>, vector<4x16x16xf32>
    tpu.vector_store %arg5[%c0_118, %c2_119, %c0_120], %68 {strides = array<i32>} : memref<4x20x16xf32, #tpu.memory_space<vmem>>, vector<4x16x16xf32>,
    %c0_121 = arith.constant 0 : index
    %c0_122 = arith.constant 0 : index
    %c0_123 = arith.constant 0 : index
    %70 = vector.load %arg5[%c0_121, %c0_122, %c0_123] : memref<4x20x16xf32, #tpu.memory_space<vmem>>, vector<4x16x16xf32>
    %c0_124 = arith.constant 0 : index
    %c1_125 = arith.constant 1 : index
    %c0_126 = arith.constant 0 : index
    %71 = vector.load %arg5[%c0_124, %c1_125, %c0_126] : memref<4x20x16xf32, #tpu.memory_space<vmem>>, vector<4x16x16xf32>
    %72 = arith.maximumf %70, %71 : vector<4x16x16xf32>
    %c0_127 = arith.constant 0 : index
    %c2_128 = arith.constant 2 : index
    %c0_129 = arith.constant 0 : index
    %73 = vector.load %arg5[%c0_127, %c2_128, %c0_129] : memref<4x20x16xf32, #tpu.memory_space<vmem>>, vector<4x16x16xf32>
    %74 = arith.maximumf %72, %73 : vector<4x16x16xf32>
    %c0_130 = arith.constant 0 : index
    %c3_131 = arith.constant 3 : index
    %c0_132 = arith.constant 0 : index
    %75 = vector.load %arg5[%c0_130, %c3_131, %c0_132] : memref<4x20x16xf32, #tpu.memory_space<vmem>>, vector<4x16x16xf32>
    %76 = arith.maximumf %74, %75 : vector<4x16x16xf32>
    %c0_133 = arith.constant 0 : index
    %c4_134 = arith.constant 4 : index
    %c0_135 = arith.constant 0 : index
    %77 = vector.load %arg5[%c0_133, %c4_134, %c0_135] : memref<4x20x16xf32, #tpu.memory_space<vmem>>, vector<4x16x16xf32>
    %78 = arith.maximumf %76, %77 : vector<4x16x16xf32>
    %c0_136 = arith.constant 0 : index
    %c0_137 = arith.constant 0 : index
    %c0_138 = arith.constant 0 : index
    %c0_139 = arith.constant 0 : index
    %c0_140 = arith.constant 0 : index
    %79 = vector.load %arg3[%c0_136, %c0_137, %c0_138, %c0_139, %c0_140] : memref<1x4x4x16x16xf32, #tpu.memory_space<vmem>>, vector<1x1x4x16x16xf32>
    %80 = vector.shape_cast %79 : vector<1x1x4x16x16xf32> to vector<4x16x16xf32>
    %81 = vector.shape_cast %78 : vector<4x16x16xf32> to vector<1x1x4x16x16xf32>
    tpu.vector_store %arg3[%c0_136, %c0_137, %c0_138, %c0_139, %c0_140], %81 {strides = array<i32>} : memref<1x4x4x16x16xf32, #tpu.memory_space<vmem>>, vector<1x1x4x16x16xf32>,
    return
  }
  func.func @transform_0(%arg0: i32, %arg1: i32) -> (i32, i32, i32, i32) {
    %c0_i32 = arith.constant 0 : i32
    %c0_i32_0 = arith.constant 0 : i32
    %c0_i32_1 = arith.constant 0 : i32
    return %arg0, %arg1, %c0_i32, %c0_i32_0 : i32, i32, i32, i32
  }
  func.func @transform_1(%arg0: i32, %arg1: i32) -> (i32, i32, i32, i32, i32) {
    %c0_i32 = arith.constant 0 : i32
    %c0_i32_0 = arith.constant 0 : i32
    %c0_i32_1 = arith.constant 0 : i32
    %c0_i32_2 = arith.constant 0 : i32
    return %arg0, %c0_i32, %arg1, %c0_i32_0, %c0_i32_1 : i32, i32, i32, i32, i32
  }
}

</mosaic_0001>

<llo_original>
// kernel: tpu_custom_call.1
$region0: #{tpu_custom_call.1}
  #allocation0 [shape = 'u32[]', space=smem, size = 0x4, offset = 0x4, fixed_abs, tag = 'smem constant byte address 0x4 - core index']
  #allocation1 [shape = 'u32[72,128]{1,0:T(1,128)}', space=vmem, size = 0x9000, scoped, tag = 'internal scratch']
  #allocation2 [shape = 'f32[4,16,20]{2,1,0:T(8,128)}', space=vmem, size = 0x8000, scoped, tag = 'scratch operand']
  #allocation3 [shape = 'f32[4,20,16]{2,1,0:T(8,128)}', space=vmem, size = 0xc000, scoped, tag = 'scratch operand']
  %s0 = inlined_call_operand.hbm [shape: f32[2,4,16,16], index: 0, kind: input, shape index: {}]
  %s1 = inlined_call_operand.hbm [shape: f32[2,4,4,16,16], index: 1, kind: output, shape index: {}]
  %s2 = sld [smem:[#allocation0]]
  $region41: #{tpu_custom_call.1} parent=0
    _
  %s4 = ssub.s32 1, %s2
  %s5 = scalar_select 0, %s4, %s2
  $region1: #{tpu_custom_call.1} parent=0
    #allocation4 [shape = 'u8[65536]{0}', space=vmem, size = 0x10000, scoped, tag = 'input window, operand 0']
    #allocation5 [shape = 's32[2]{0}', space=sflag, size = 0x8, scoped, tag = 'scoped memory for tpu_custom_call.1']
    #allocation6 [shape = 's32[2]{0}', space=sflag, size = 0x8, scoped, tag = 'scoped memory for tpu_custom_call.1']
    #allocation7 [shape = 'u8[262144]{0}', space=vmem, size = 0x40000, scoped, tag = 'output window, operand 0']
    %6 = vsyncpa [#allocation5], 0
    %s7 = scalar_lea.sflag [#allocation5], 1
    %8 = vsyncpa %s7, 0
    %9 = vsyncpa [#allocation6], 0
    %s10 = scalar_lea.sflag [#allocation6], 1
    %11 = vsyncpa %s10, 0
    loop: start=0, step=1, limit=4
    $region2: #{tpu_custom_call.1} parent=1 // loop_pre_header
      _
    $region3: #{tpu_custom_call.1} parent=1 // loop_header
      %s13 = sphi 0, %s17
      %p14 = scmp.ge.s32.totalorder %s13, 4
      %s20 = sphi 0, %s32
      %s21 = sphi 0, %s28
      %s22 = sphi 0, %s20
      %s23 = sphi 0, %s21
      %s24 = sphi 0, %s22
      %s25 = sphi 0, %s23
      %s37 = sphi 0, %s39
      %s40 = sphi 0, %s37
      %s41 = sphi 0, %s40
      %s57 = sphi 0, %s41
      %s65 = sphi 0, %s67
      %s68 = sphi 0, %s65
      %s69 = sphi 0, %s68
      %s85 = sphi 0, %s69
    $region4: #{tpu_custom_call.1} parent=1 // loop_header_branch
      %16 = sbr.rel (%p14) target = $region8
    $region5: #{tpu_custom_call.1} parent=1 // loop_body
      %s18 = ssub.s32 %s13, 1
      %s19 = ssub.s32 %s13, 2
      %s26 = sadd.s32 1, %s21
      %p27 = scmp.ge.s32.totalorder %s26, 1
      %s28 = scalar_select %p27, 0, %s26
      %s29 = sadd.s32 1, %s20
      %s30 = scalar_select %p27, %s29, %s20
      %p31 = scmp.ge.s32.totalorder %s30, 2
      %s32 = scalar_select %p31, 0, %s30
      %s33 = ssub.s32 %s20, %s32
      %s34 = ssub.s32 %s21, %s28
      %s35 = sor.u32 %s33, %s34
      %p36 = scmp.eq.s32.totalorder %s35, 0
      %s38 = sadd.s32 %s37, 1
      %s39 = scalar_select %p36, %s37, %s38
      %p42 = pneg %p36
      %p43 = scmp.eq.s32.totalorder %s13, 1
      %p44 = por %p42, %p43
      %p45 = scmp.ne.s32.totalorder %s37, %s40
      %p46 = scmp.eq.s32.totalorder %s13, 0
      %p47 = por %p45, %p46
      %p48 = scmp.ne.s32.totalorder %s37, %s40
      %p49 = scmp.eq.s32.totalorder %s18, 1
      %p50 = por %p48, %p49
      %p51 = scmp.ne.s32.totalorder %s40, %s41
      %p52 = scmp.eq.s32.totalorder %s18, 0
      %p53 = por %p51, %p52
      %p54 = scmp.ne.s32.totalorder %s40, %s41
      %p55 = scmp.eq.s32.totalorder %s19, 1
      %p56 = por %p54, %p55
      %p58 = scmp.ne.s32.totalorder %s41, %s57
      %p59 = scmp.eq.s32.totalorder %s19, 0
      %p60 = por %p58, %p59
      %s61 = ssub.s32 %s20, %s32
      %s62 = ssub.s32 %s21, %s28
      %s63 = sor.u32 %s61, %s62
      %p64 = scmp.eq.s32.totalorder %s63, 0
      %s66 = sadd.s32 %s65, 1
      %s67 = scalar_select %p64, %s65, %s66
      %p70 = pneg %p64
      %p71 = scmp.eq.s32.totalorder %s13, 1
      %p72 = por %p70, %p71
      %p73 = scmp.ne.s32.totalorder %s65, %s68
      %p74 = scmp.eq.s32.totalorder %s13, 0
      %p75 = por %p73, %p74
      %p76 = scmp.ne.s32.totalorder %s65, %s68
      %p77 = scmp.eq.s32.totalorder %s18, 1
      %p78 = por %p76, %p77
      %p79 = scmp.ne.s32.totalorder %s68, %s69
      %p80 = scmp.eq.s32.totalorder %s18, 0
      %p81 = por %p79, %p80
      %p82 = scmp.ne.s32.totalorder %s68, %s69
      %p83 = scmp.eq.s32.totalorder %s19, 1
      %p84 = por %p82, %p83
      %p86 = scmp.ne.s32.totalorder %s69, %s85
      %p87 = scmp.eq.s32.totalorder %s19, 0
      %p88 = por %p86, %p87
      %p89 = scmp.le.s32.totalorder 1, %s13
      %p90 = scmp.lt.s32.totalorder %s13, 3
      %p91 = pnand %p89, %p90
      %p92 = pneg %p91
      // Predicated region
      $region9: #{tpu_custom_call.1} parent=5 // pred_check
        _
      $region10: #{tpu_custom_call.1} parent=5 // pred_check_branch
        %94 = sbr.rel (%p91) target = $region12
      $region11: #{tpu_custom_call.1} parent=5 // pred_region
        %s95 = ssub.s32 %s13, 1
      $region12: #{tpu_custom_call.1} parent=5 // pred_fallthru
        _
      %p96 = scmp.lt.s32.totalorder %s13, 2
      // Predicated region
      $region13: #{tpu_custom_call.1} parent=5 // pred_check
        %p97 = pneg %p96
      $region14: #{tpu_custom_call.1} parent=5 // pred_check_branch
        %99 = sbr.rel (%p97) target = $region16
      $region15: #{tpu_custom_call.1} parent=5 // pred_region
        // Predicated region
        $region17: #{tpu_custom_call.1} parent=15 // pred_check
          %p100 = pneg %p47
        $region18: #{tpu_custom_call.1} parent=15 // pred_check_branch
          %102 = sbr.rel (%p100) target = $region20
        $region19: #{tpu_custom_call.1} parent=15 // pred_region
          %s103 = sand.u32 %s37, 1
          %s104 = scalar_lea.sflag [#allocation5], %s103
          %s105 = sand.u32 %s37, 1
          %s106 = smul.addr %s105, 64
          %s107 = scalar_lea.vmem [#allocation4], %s106
          %s108 = smul.u32 4, %s21
          %110 = vsyncadd %s104, 0
          %s111 = smul.addr %s108, 2
          %s112 = smul.addr %s20, 8
          %s113 = sadd.s32 %s111, %s112
          %s114 = smul.addr %s113, 8
          %s115 = scalar_lea.hbm %s0, %s114
          %s116 = sshll.u32 %s115, 4
          %s117 = int_to_ptr.hbm [resolvable:$true] %s116
          %s118 = sshll.u32 %s107, 4
          %s119 = int_to_ptr.vmem [resolvable:$true] %s118
          %124 = dma.hbm_to_vmem [thread:$0]  %s117, 1024, %s119, %s104, 128, 128, 8
        $region20: #{tpu_custom_call.1} parent=15 // pred_fallthru
          _
      $region16: #{tpu_custom_call.1} parent=5 // pred_fallthru
        _
      %p125 = scmp.le.s32.totalorder 1, %s13
      %p126 = scmp.lt.s32.totalorder %s13, 3
      %p127 = pnand %p125, %p126
      %p128 = pneg %p127
      // Predicated region
      $region21: #{tpu_custom_call.1} parent=5 // pred_check
        _
      $region22: #{tpu_custom_call.1} parent=5 // pred_check_branch
        %130 = sbr.rel (%p127) target = $region24
      $region23: #{tpu_custom_call.1} parent=5 // pred_region
        %s131 = ssub.s32 %s13, 1
        %s132 = sand.u32 %s40, 1
        %s133 = scalar_lea.sflag [#allocation5], %s132
        %s134 = sand.u32 %s40, 1
        %s135 = smul.addr %s134, 64
        %s136 = scalar_lea.vmem [#allocation4], %s135
        // Predicated region
        $region25: #{tpu_custom_call.1} parent=23 // pred_check
          %p137 = pneg %p53
        $region26: #{tpu_custom_call.1} parent=23 // pred_check_branch
          %139 = sbr.rel (%p137) target = $region28
        $region27: #{tpu_custom_call.1} parent=23 // pred_region
          %141 = dma.done %s133, 1024
        $region28: #{tpu_custom_call.1} parent=23 // pred_fallthru
          _
        %s142 = sand.u32 %s40, 1
        %s143 = scalar_lea.sflag [#allocation5], %s142
        %s144 = sand.u32 %s40, 1
        %s145 = smul.addr %s144, 64
        %s146 = scalar_lea.vmem [#allocation4], %s145
        %p147 = pneg %p53
        %p148 = pneg %p50
        %p149 = pneg %p81
        %p150 = pneg %p78
        %s151 = sand.u32 %s68, 1
        %s152 = scalar_lea.sflag [#allocation6], %s151
        %s153 = sand.u32 %s68, 1
        %s154 = smul.addr %s153, 256
        %s155 = scalar_lea.vmem [#allocation7], %s154
        %s156 = smul.u32 4, %s23
        %s157 = smul.u32 4, %s23
        %v158 = vld [vmem:[%s136] sm:$0xff]
        %v159 = vld [vmem:[%s136 + $0x8] sm:$0xff]
        %v160 = vld [vmem:[%s136 + $0x10] sm:$0xff]
        %v161 = vld [vmem:[%s136 + $0x18] sm:$0xff]
        %v162 = vld [vmem:[%s136 + $0x20] sm:$0xff]
        %v163 = vld [vmem:[%s136 + $0x28] sm:$0xff]
        %v164 = vld [vmem:[%s136 + $0x30] sm:$0xff]
        %v165 = vld [vmem:[%s136 + $0x38] sm:$0xff]
        %s166 = scalar_lea.vmem %s155, 192 [#allocation7]
        %vm167 = vcmask 130048
        %168 = vst.msk [vmem:[%s166] sm:$0xff] %vm167, %v158
        %169 = vst.msk [vmem:[%s166 + $0x8] sm:$0xff] %vm167, %v159
        %170 = vst.msk [vmem:[%s166 + $0x10] sm:$0xff] %vm167, %v160
        %171 = vst.msk [vmem:[%s166 + $0x18] sm:$0xff] %vm167, %v161
        %172 = vst.msk [vmem:[%s166 + $0x20] sm:$0xff] %vm167, %v162
        %173 = vst.msk [vmem:[%s166 + $0x28] sm:$0xff] %vm167, %v163
        %174 = vst.msk [vmem:[%s166 + $0x30] sm:$0xff] %vm167, %v164
        %175 = vst.msk [vmem:[%s166 + $0x38] sm:$0xff] %vm167, %v165
        %vm176 = vcmask 15360
        %177 = vst.msk [vmem:[#allocation2] sm:$0xff] %vm176, -inf
        %178 = vst.msk [vmem:[#allocation2 + $0x8] sm:$0xff] %vm176, -inf
        %179 = vst.msk [vmem:[#allocation2 + $0x10] sm:$0xff] %vm176, -inf
        %180 = vst.msk [vmem:[#allocation2 + $0x18] sm:$0xff] %vm176, -inf
        %181 = vst.msk [vmem:[#allocation2 + $0x20] sm:$0xff] %vm176, -inf
        %182 = vst.msk [vmem:[#allocation2 + $0x28] sm:$0xff] %vm176, -inf
        %183 = vst.msk [vmem:[#allocation2 + $0x30] sm:$0xff] %vm176, -inf
        %184 = vst.msk [vmem:[#allocation2 + $0x38] sm:$0xff] %vm176, -inf
        %vm185 = vcmask 162960
        %186 = vst.msk [vmem:[#allocation2] sm:$0xff] %vm185, -inf
        %187 = vst.msk [vmem:[#allocation2 + $0x8] sm:$0xff] %vm185, -inf
        %188 = vst.msk [vmem:[#allocation2 + $0x10] sm:$0xff] %vm185, -inf
        %189 = vst.msk [vmem:[#allocation2 + $0x18] sm:$0xff] %vm185, -inf
        %190 = vst.msk [vmem:[#allocation2 + $0x20] sm:$0xff] %vm185, -inf
        %191 = vst.msk [vmem:[#allocation2 + $0x28] sm:$0xff] %vm185, -inf
        %192 = vst.msk [vmem:[#allocation2 + $0x30] sm:$0xff] %vm185, -inf
        %193 = vst.msk [vmem:[#allocation2 + $0x38] sm:$0xff] %vm185, -inf
        %vm194 = vcmask 123904
        %195 = vst.msk [vmem:[#allocation3] sm:$0x3] %vm194, -inf
        %196 = vst.msk [vmem:[#allocation3 + $0x18] sm:$0x3] %vm194, -inf
        %197 = vst.msk [vmem:[#allocation3 + $0x30] sm:$0x3] %vm194, -inf
        %198 = vst.msk [vmem:[#allocation3 + $0x48] sm:$0x3] %vm194, -inf
        %199 = vst.msk [vmem:[#allocation3 + $0x12] sm:$0x3] %vm194, -inf
        %200 = vst.msk [vmem:[#allocation3 + $0x2a] sm:$0x3] %vm194, -inf
        %201 = vst.msk [vmem:[#allocation3 + $0x42] sm:$0x3] %vm194, -inf
        %202 = vst.msk [vmem:[#allocation3 + $0x5a] sm:$0x3] %vm194, -inf
        %211 = vrot.lane.b32.xlu0 %v158, 2
        %v212 = vpop.permute.xlu0 %211
        %213 = vrot.lane.b32.xlu0 %v159, 2
        %v214 = vpop.permute.xlu0 %213
        %215 = vrot.lane.b32.xlu0 %v160, 2
        %v216 = vpop.permute.xlu0 %215
        %217 = vrot.lane.b32.xlu0 %v161, 2
        %v218 = vpop.permute.xlu0 %217
        %219 = vrot.lane.b32.xlu0 %v162, 2
        %v220 = vpop.permute.xlu0 %219
        %221 = vrot.lane.b32.xlu0 %v163, 2
        %v222 = vpop.permute.xlu0 %221
        %223 = vrot.lane.b32.xlu0 %v164, 2
        %v224 = vpop.permute.xlu0 %223
        %225 = vrot.lane.b32.xlu0 %v165, 2
        %v226 = vpop.permute.xlu0 %225
        %vm235 = vcmask 146448
        %236 = vst.msk [vmem:[#allocation2] sm:$0xff] %vm235, %v212
        %237 = vst.msk [vmem:[#allocation2 + $0x8] sm:$0xff] %vm235, %v214
        %238 = vst.msk [vmem:[#allocation2 + $0x10] sm:$0xff] %vm235, %v216
        %239 = vst.msk [vmem:[#allocation2 + $0x18] sm:$0xff] %vm235, %v218
        %240 = vst.msk [vmem:[#allocation2 + $0x20] sm:$0xff] %vm235, %v220
        %241 = vst.msk [vmem:[#allocation2 + $0x28] sm:$0xff] %vm235, %v222
        %242 = vst.msk [vmem:[#allocation2 + $0x30] sm:$0xff] %vm235, %v224
        %243 = vst.msk [vmem:[#allocation2 + $0x38] sm:$0xff] %vm235, %v226
        %v244 = vld [vmem:[#allocation2] sm:$0xff]
        %v245 = vld [vmem:[#allocation2 + $0x8] sm:$0xff]
        %v246 = vld [vmem:[#allocation2 + $0x10] sm:$0xff]
        %v247 = vld [vmem:[#allocation2 + $0x18] sm:$0xff]
        %v248 = vld [vmem:[#allocation2 + $0x20] sm:$0xff]
        %v249 = vld [vmem:[#allocation2 + $0x28] sm:$0xff]
        %v250 = vld [vmem:[#allocation2 + $0x30] sm:$0xff]
        %v251 = vld [vmem:[#allocation2 + $0x38] sm:$0xff]
        %260 = vrot.lane.b32.xlu0 %v244, 127
        %v261 = vpop.permute.xlu0 %260
        %262 = vrot.lane.b32.xlu0 %v245, 127
        %v263 = vpop.permute.xlu0 %262
        %264 = vrot.lane.b32.xlu0 %v246, 127
        %v265 = vpop.permute.xlu0 %264
        %266 = vrot.lane.b32.xlu0 %v247, 127
        %v267 = vpop.permute.xlu0 %266
        %268 = vrot.lane.b32.xlu0 %v248, 127
        %v269 = vpop.permute.xlu0 %268
        %270 = vrot.lane.b32.xlu0 %v249, 127
        %v271 = vpop.permute.xlu0 %270
        %272 = vrot.lane.b32.xlu0 %v250, 127
        %v273 = vpop.permute.xlu0 %272
        %274 = vrot.lane.b32.xlu0 %v251, 127
        %v275 = vpop.permute.xlu0 %274
        %v284 = vmax.f32 %v244, %v261
        %v285 = vmax.f32 %v245, %v263
        %v286 = vmax.f32 %v246, %v265
        %v287 = vmax.f32 %v247, %v267
        %v288 = vmax.f32 %v248, %v269
        %v289 = vmax.f32 %v249, %v271
        %v290 = vmax.f32 %v250, %v273
        %v291 = vmax.f32 %v251, %v275
        %292 = vrot.lane.b32.xlu0 %v244, 126
        %v293 = vpop.permute.xlu0 %292
        %294 = vrot.lane.b32.xlu0 %v245, 126
        %v295 = vpop.permute.xlu0 %294
        %296 = vrot.lane.b32.xlu0 %v246, 126
        %v297 = vpop.permute.xlu0 %296
        %298 = vrot.lane.b32.xlu0 %v247, 126
        %v299 = vpop.permute.xlu0 %298
        %300 = vrot.lane.b32.xlu0 %v248, 126
        %v301 = vpop.permute.xlu0 %300
        %302 = vrot.lane.b32.xlu0 %v249, 126
        %v303 = vpop.permute.xlu0 %302
        %304 = vrot.lane.b32.xlu0 %v250, 126
        %v305 = vpop.permute.xlu0 %304
        %306 = vrot.lane.b32.xlu0 %v251, 126
        %v307 = vpop.permute.xlu0 %306
        %v316 = vmax.f32 %v284, %v293
        %v317 = vmax.f32 %v285, %v295
        %v318 = vmax.f32 %v286, %v297
        %v319 = vmax.f32 %v287, %v299
        %v320 = vmax.f32 %v288, %v301
        %v321 = vmax.f32 %v289, %v303
        %v322 = vmax.f32 %v290, %v305
        %v323 = vmax.f32 %v291, %v307
        %324 = vrot.lane.b32.xlu0 %v244, 125
        %v325 = vpop.permute.xlu0 %324
        %326 = vrot.lane.b32.xlu0 %v245, 125
        %v327 = vpop.permute.xlu0 %326
        %328 = vrot.lane.b32.xlu0 %v246, 125
        %v329 = vpop.permute.xlu0 %328
        %330 = vrot.lane.b32.xlu0 %v247, 125
        %v331 = vpop.permute.xlu0 %330
        %332 = vrot.lane.b32.xlu0 %v248, 125
        %v333 = vpop.permute.xlu0 %332
        %334 = vrot.lane.b32.xlu0 %v249, 125
        %v335 = vpop.permute.xlu0 %334
        %336 = vrot.lane.b32.xlu0 %v250, 125
        %v337 = vpop.permute.xlu0 %336
        %338 = vrot.lane.b32.xlu0 %v251, 125
        %v339 = vpop.permute.xlu0 %338
        %v348 = vmax.f32 %v316, %v325
        %v349 = vmax.f32 %v317, %v327
        %v350 = vmax.f32 %v318, %v329
        %v351 = vmax.f32 %v319, %v331
        %v352 = vmax.f32 %v320, %v333
        %v353 = vmax.f32 %v321, %v335
        %v354 = vmax.f32 %v322, %v337
        %v355 = vmax.f32 %v323, %v339
        %356 = vrot.lane.b32.xlu0 %v244, 124
        %v357 = vpop.permute.xlu0 %356
        %358 = vrot.lane.b32.xlu0 %v245, 124
        %v359 = vpop.permute.xlu0 %358
        %360 = vrot.lane.b32.xlu0 %v246, 124
        %v361 = vpop.permute.xlu0 %360
        %362 = vrot.lane.b32.xlu0 %v247, 124
        %v363 = vpop.permute.xlu0 %362
        %364 = vrot.lane.b32.xlu0 %v248, 124
        %v365 = vpop.permute.xlu0 %364
        %366 = vrot.lane.b32.xlu0 %v249, 124
        %v367 = vpop.permute.xlu0 %366
        %368 = vrot.lane.b32.xlu0 %v250, 124
        %v369 = vpop.permute.xlu0 %368
        %370 = vrot.lane.b32.xlu0 %v251, 124
        %v371 = vpop.permute.xlu0 %370
        %v380 = vmax.f32 %v348, %v357
        %v381 = vmax.f32 %v349, %v359
        %v382 = vmax.f32 %v350, %v361
        %v383 = vmax.f32 %v351, %v363
        %v384 = vmax.f32 %v352, %v365
        %v385 = vmax.f32 %v353, %v367
        %v386 = vmax.f32 %v354, %v369
        %v387 = vmax.f32 %v355, %v371
        %388 = vst.msk [vmem:[#allocation3 + $0x2] sm:$0xff] %vm167, %v380
        %389 = vst.msk [vmem:[#allocation3 + $0xa] sm:$0xff] %vm167, %v381
        %390 = vst.msk [vmem:[#allocation3 + $0x1a] sm:$0xff] %vm167, %v382
        %391 = vst.msk [vmem:[#allocation3 + $0x22] sm:$0xff] %vm167, %v383
        %392 = vst.msk [vmem:[#allocation3 + $0x32] sm:$0xff] %vm167, %v384
        %393 = vst.msk [vmem:[#allocation3 + $0x3a] sm:$0xff] %vm167, %v385
        %394 = vst.msk [vmem:[#allocation3 + $0x4a] sm:$0xff] %vm167, %v386
        %395 = vst.msk [vmem:[#allocation3 + $0x52] sm:$0xff] %vm167, %v387
        %v396 = vld [vmem:[#allocation3] sm:$0xff]
        %v397 = vld [vmem:[#allocation3 + $0x8] sm:$0xff]
        %v398 = vld [vmem:[#allocation3 + $0x18] sm:$0xff]
        %v399 = vld [vmem:[#allocation3 + $0x20] sm:$0xff]
        %v400 = vld [vmem:[#allocation3 + $0x30] sm:$0xff]
        %v401 = vld [vmem:[#allocation3 + $0x38] sm:$0xff]
        %v402 = vld [vmem:[#allocation3 + $0x48] sm:$0xff]
        %v403 = vld [vmem:[#allocation3 + $0x50] sm:$0xff]
        %v404 = vld [vmem:[#allocation3 + $0x1] sm:$0xff]
        %v405 = vld [vmem:[#allocation3 + $0x9] sm:$0xff]
        %v406 = vld [vmem:[#allocation3 + $0x19] sm:$0xff]
        %v407 = vld [vmem:[#allocation3 + $0x21] sm:$0xff]
        %v408 = vld [vmem:[#allocation3 + $0x31] sm:$0xff]
        %v409 = vld [vmem:[#allocation3 + $0x39] sm:$0xff]
        %v410 = vld [vmem:[#allocation3 + $0x49] sm:$0xff]
        %v411 = vld [vmem:[#allocation3 + $0x51] sm:$0xff]
        %v412 = vmax.f32 %v396, %v404
        %v413 = vmax.f32 %v397, %v405
        %v414 = vmax.f32 %v398, %v406
        %v415 = vmax.f32 %v399, %v407
        %v416 = vmax.f32 %v400, %v408
        %v417 = vmax.f32 %v401, %v409
        %v418 = vmax.f32 %v402, %v410
        %v419 = vmax.f32 %v403, %v411
        %v420 = vld [vmem:[#allocation3 + $0x2] sm:$0xff]
        %v421 = vld [vmem:[#allocation3 + $0xa] sm:$0xff]
        %v422 = vld [vmem:[#allocation3 + $0x1a] sm:$0xff]
        %v423 = vld [vmem:[#allocation3 + $0x22] sm:$0xff]
        %v424 = vld [vmem:[#allocation3 + $0x32] sm:$0xff]
        %v425 = vld [vmem:[#allocation3 + $0x3a] sm:$0xff]
        %v426 = vld [vmem:[#allocation3 + $0x4a] sm:$0xff]
        %v427 = vld [vmem:[#allocation3 + $0x52] sm:$0xff]
        %v428 = vmax.f32 %v412, %v420
        %v429 = vmax.f32 %v413, %v421
        %v430 = vmax.f32 %v414, %v422
        %v431 = vmax.f32 %v415, %v423
        %v432 = vmax.f32 %v416, %v424
        %v433 = vmax.f32 %v417, %v425
        %v434 = vmax.f32 %v418, %v426
        %v435 = vmax.f32 %v419, %v427
        %v436 = vld [vmem:[#allocation3 + $0x3] sm:$0xff]
        %v437 = vld [vmem:[#allocation3 + $0xb] sm:$0xff]
        %v438 = vld [vmem:[#allocation3 + $0x1b] sm:$0xff]
        %v439 = vld [vmem:[#allocation3 + $0x23] sm:$0xff]
        %v440 = vld [vmem:[#allocation3 + $0x33] sm:$0xff]
        %v441 = vld [vmem:[#allocation3 + $0x3b] sm:$0xff]
        %v442 = vld [vmem:[#allocation3 + $0x4b] sm:$0xff]
        %v443 = vld [vmem:[#allocation3 + $0x53] sm:$0xff]
        %v444 = vmax.f32 %v428, %v436
        %v445 = vmax.f32 %v429, %v437
        %v446 = vmax.f32 %v430, %v438
        %v447 = vmax.f32 %v431, %v439
        %v448 = vmax.f32 %v432, %v440
        %v449 = vmax.f32 %v433, %v441
        %v450 = vmax.f32 %v434, %v442
        %v451 = vmax.f32 %v435, %v443
        %v452 = vld [vmem:[#allocation3 + $0x4] sm:$0xff]
        %v453 = vld [vmem:[#allocation3 + $0xc] sm:$0xff]
        %v454 = vld [vmem:[#allocation3 + $0x1c] sm:$0xff]
        %v455 = vld [vmem:[#allocation3 + $0x24] sm:$0xff]
        %v456 = vld [vmem:[#allocation3 + $0x34] sm:$0xff]
        %v457 = vld [vmem:[#allocation3 + $0x3c] sm:$0xff]
        %v458 = vld [vmem:[#allocation3 + $0x4c] sm:$0xff]
        %v459 = vld [vmem:[#allocation3 + $0x54] sm:$0xff]
        %v460 = vmax.f32 %v444, %v452
        %v461 = vmax.f32 %v445, %v453
        %v462 = vmax.f32 %v446, %v454
        %v463 = vmax.f32 %v447, %v455
        %v464 = vmax.f32 %v448, %v456
        %v465 = vmax.f32 %v449, %v457
        %v466 = vmax.f32 %v450, %v458
        %v467 = vmax.f32 %v451, %v459
        %s468 = scalar_lea.vmem %s155, 128 [#allocation7]
        %469 = vst.msk [vmem:[%s468] sm:$0xff] %vm167, %v460
        %470 = vst.msk [vmem:[%s468 + $0x8] sm:$0xff] %vm167, %v461
        %471 = vst.msk [vmem:[%s468 + $0x10] sm:$0xff] %vm167, %v462
        %472 = vst.msk [vmem:[%s468 + $0x18] sm:$0xff] %vm167, %v463
        %473 = vst.msk [vmem:[%s468 + $0x20] sm:$0xff] %vm167, %v464
        %474 = vst.msk [vmem:[%s468 + $0x28] sm:$0xff] %vm167, %v465
        %475 = vst.msk [vmem:[%s468 + $0x30] sm:$0xff] %vm167, %v466
        %476 = vst.msk [vmem:[%s468 + $0x38] sm:$0xff] %vm167, %v467
        %485 = vrot.lane.b32.xlu0 %v460, 2
        %v486 = vpop.permute.xlu0 %485
        %487 = vrot.lane.b32.xlu0 %v461, 2
        %v488 = vpop.permute.xlu0 %487
        %489 = vrot.lane.b32.xlu0 %v462, 2
        %v490 = vpop.permute.xlu0 %489
        %491 = vrot.lane.b32.xlu0 %v463, 2
        %v492 = vpop.permute.xlu0 %491
        %493 = vrot.lane.b32.xlu0 %v464, 2
        %v494 = vpop.permute.xlu0 %493
        %495 = vrot.lane.b32.xlu0 %v465, 2
        %v496 = vpop.permute.xlu0 %495
        %497 = vrot.lane.b32.xlu0 %v466, 2
        %v498 = vpop.permute.xlu0 %497
        %499 = vrot.lane.b32.xlu0 %v467, 2
        %v500 = vpop.permute.xlu0 %499
        %509 = vst.msk [vmem:[#allocation2] sm:$0xff] %vm235, %v486
        %510 = vst.msk [vmem:[#allocation2 + $0x8] sm:$0xff] %vm235, %v488
        %511 = vst.msk [vmem:[#allocation2 + $0x10] sm:$0xff] %vm235, %v490
        %512 = vst.msk [vmem:[#allocation2 + $0x18] sm:$0xff] %vm235, %v492
        %513 = vst.msk [vmem:[#allocation2 + $0x20] sm:$0xff] %vm235, %v494
        %514 = vst.msk [vmem:[#allocation2 + $0x28] sm:$0xff] %vm235, %v496
        %515 = vst.msk [vmem:[#allocation2 + $0x30] sm:$0xff] %vm235, %v498
        %516 = vst.msk [vmem:[#allocation2 + $0x38] sm:$0xff] %vm235, %v500
        %v517 = vld [vmem:[#allocation2] sm:$0xff]
        %v518 = vld [vmem:[#allocation2 + $0x8] sm:$0xff]
        %v519 = vld [vmem:[#allocation2 + $0x10] sm:$0xff]
        %v520 = vld [vmem:[#allocation2 + $0x18] sm:$0xff]
        %v521 = vld [vmem:[#allocation2 + $0x20] sm:$0xff]
        %v522 = vld [vmem:[#allocation2 + $0x28] sm:$0xff]
        %v523 = vld [vmem:[#allocation2 + $0x30] sm:$0xff]
        %v524 = vld [vmem:[#allocation2 + $0x38] sm:$0xff]
        %533 = vrot.lane.b32.xlu0 %v517, 127
        %v534 = vpop.permute.xlu0 %533
        %535 = vrot.lane.b32.xlu0 %v518, 127
        %v536 = vpop.permute.xlu0 %535
        %537 = vrot.lane.b32.xlu0 %v519, 127
        %v538 = vpop.permute.xlu0 %537
        %539 = vrot.lane.b32.xlu0 %v520, 127
        %v540 = vpop.permute.xlu0 %539
        %541 = vrot.lane.b32.xlu0 %v521, 127
        %v542 = vpop.permute.xlu0 %541
        %543 = vrot.lane.b32.xlu0 %v522, 127
        %v544 = vpop.permute.xlu0 %543
        %545 = vrot.lane.b32.xlu0 %v523, 127
        %v546 = vpop.permute.xlu0 %545
        %547 = vrot.lane.b32.xlu0 %v524, 127
        %v548 = vpop.permute.xlu0 %547
        %v557 = vmax.f32 %v517, %v534
        %v558 = vmax.f32 %v518, %v536
        %v559 = vmax.f32 %v519, %v538
        %v560 = vmax.f32 %v520, %v540
        %v561 = vmax.f32 %v521, %v542
        %v562 = vmax.f32 %v522, %v544
        %v563 = vmax.f32 %v523, %v546
        %v564 = vmax.f32 %v524, %v548
        %565 = vrot.lane.b32.xlu0 %v517, 126
        %v566 = vpop.permute.xlu0 %565
        %567 = vrot.lane.b32.xlu0 %v518, 126
        %v568 = vpop.permute.xlu0 %567
        %569 = vrot.lane.b32.xlu0 %v519, 126
        %v570 = vpop.permute.xlu0 %569
        %571 = vrot.lane.b32.xlu0 %v520, 126
        %v572 = vpop.permute.xlu0 %571
        %573 = vrot.lane.b32.xlu0 %v521, 126
        %v574 = vpop.permute.xlu0 %573
        %575 = vrot.lane.b32.xlu0 %v522, 126
        %v576 = vpop.permute.xlu0 %575
        %577 = vrot.lane.b32.xlu0 %v523, 126
        %v578 = vpop.permute.xlu0 %577
        %579 = vrot.lane.b32.xlu0 %v524, 126
        %v580 = vpop.permute.xlu0 %579
        %v589 = vmax.f32 %v557, %v566
        %v590 = vmax.f32 %v558, %v568
        %v591 = vmax.f32 %v559, %v570
        %v592 = vmax.f32 %v560, %v572
        %v593 = vmax.f32 %v561, %v574
        %v594 = vmax.f32 %v562, %v576
        %v595 = vmax.f32 %v563, %v578
        %v596 = vmax.f32 %v564, %v580
        %597 = vrot.lane.b32.xlu0 %v517, 125
        %v598 = vpop.permute.xlu0 %597
        %599 = vrot.lane.b32.xlu0 %v518, 125
        %v600 = vpop.permute.xlu0 %599
        %601 = vrot.lane.b32.xlu0 %v519, 125
        %v602 = vpop.permute.xlu0 %601
        %603 = vrot.lane.b32.xlu0 %v520, 125
        %v604 = vpop.permute.xlu0 %603
        %605 = vrot.lane.b32.xlu0 %v521, 125
        %v606 = vpop.permute.xlu0 %605
        %607 = vrot.lane.b32.xlu0 %v522, 125
        %v608 = vpop.permute.xlu0 %607
        %609 = vrot.lane.b32.xlu0 %v523, 125
        %v610 = vpop.permute.xlu0 %609
        %611 = vrot.lane.b32.xlu0 %v524, 125
        %v612 = vpop.permute.xlu0 %611
        %v621 = vmax.f32 %v589, %v598
        %v622 = vmax.f32 %v590, %v600
        %v623 = vmax.f32 %v591, %v602
        %v624 = vmax.f32 %v592, %v604
        %v625 = vmax.f32 %v593, %v606
        %v626 = vmax.f32 %v594, %v608
        %v627 = vmax.f32 %v595, %v610
        %v628 = vmax.f32 %v596, %v612
        %629 = vrot.lane.b32.xlu0 %v517, 124
        %v630 = vpop.permute.xlu0 %629
        %631 = vrot.lane.b32.xlu0 %v518, 124
        %v632 = vpop.permute.xlu0 %631
        %633 = vrot.lane.b32.xlu0 %v519, 124
        %v634 = vpop.permute.xlu0 %633
        %635 = vrot.lane.b32.xlu0 %v520, 124
        %v636 = vpop.permute.xlu0 %635
        %637 = vrot.lane.b32.xlu0 %v521, 124
        %v638 = vpop.permute.xlu0 %637
        %639 = vrot.lane.b32.xlu0 %v522, 124
        %v640 = vpop.permute.xlu0 %639
        %641 = vrot.lane.b32.xlu0 %v523, 124
        %v642 = vpop.permute.xlu0 %641
        %643 = vrot.lane.b32.xlu0 %v524, 124
        %v644 = vpop.permute.xlu0 %643
        %v653 = vmax.f32 %v621, %v630
        %v654 = vmax.f32 %v622, %v632
        %v655 = vmax.f32 %v623, %v634
        %v656 = vmax.f32 %v624, %v636
        %v657 = vmax.f32 %v625, %v638
        %v658 = vmax.f32 %v626, %v640
        %v659 = vmax.f32 %v627, %v642
        %v660 = vmax.f32 %v628, %v644
        %661 = vst.msk [vmem:[#allocation3 + $0x2] sm:$0xff] %vm167, %v653
        %662 = vst.msk [vmem:[#allocation3 + $0xa] sm:$0xff] %vm167, %v654
        %663 = vst.msk [vmem:[#allocation3 + $0x1a] sm:$0xff] %vm167, %v655
        %664 = vst.msk [vmem:[#allocation3 + $0x22] sm:$0xff] %vm167, %v656
        %665 = vst.msk [vmem:[#allocation3 + $0x32] sm:$0xff] %vm167, %v657
        %666 = vst.msk [vmem:[#allocation3 + $0x3a] sm:$0xff] %vm167, %v658
        %667 = vst.msk [vmem:[#allocation3 + $0x4a] sm:$0xff] %vm167, %v659
        %668 = vst.msk [vmem:[#allocation3 + $0x52] sm:$0xff] %vm167, %v660
        %v669 = vld [vmem:[#allocation3] sm:$0xff]
        %v670 = vld [vmem:[#allocation3 + $0x8] sm:$0xff]
        %v671 = vld [vmem:[#allocation3 + $0x18] sm:$0xff]
        %v672 = vld [vmem:[#allocation3 + $0x20] sm:$0xff]
        %v673 = vld [vmem:[#allocation3 + $0x30] sm:$0xff]
        %v674 = vld [vmem:[#allocation3 + $0x38] sm:$0xff]
        %v675 = vld [vmem:[#allocation3 + $0x48] sm:$0xff]
        %v676 = vld [vmem:[#allocation3 + $0x50] sm:$0xff]
        %v677 = vld [vmem:[#allocation3 + $0x1] sm:$0xff]
        %v678 = vld [vmem:[#allocation3 + $0x9] sm:$0xff]
        %v679 = vld [vmem:[#allocation3 + $0x19] sm:$0xff]
        %v680 = vld [vmem:[#allocation3 + $0x21] sm:$0xff]
        %v681 = vld [vmem:[#allocation3 + $0x31] sm:$0xff]
        %v682 = vld [vmem:[#allocation3 + $0x39] sm:$0xff]
        %v683 = vld [vmem:[#allocation3 + $0x49] sm:$0xff]
        %v684 = vld [vmem:[#allocation3 + $0x51] sm:$0xff]
        %v685 = vmax.f32 %v669, %v677
        %v686 = vmax.f32 %v670, %v678
        %v687 = vmax.f32 %v671, %v679
        %v688 = vmax.f32 %v672, %v680
        %v689 = vmax.f32 %v673, %v681
        %v690 = vmax.f32 %v674, %v682
        %v691 = vmax.f32 %v675, %v683
        %v692 = vmax.f32 %v676, %v684
        %v693 = vld [vmem:[#allocation3 + $0x2] sm:$0xff]
        %v694 = vld [vmem:[#allocation3 + $0xa] sm:$0xff]
        %v695 = vld [vmem:[#allocation3 + $0x1a] sm:$0xff]
        %v696 = vld [vmem:[#allocation3 + $0x22] sm:$0xff]
        %v697 = vld [vmem:[#allocation3 + $0x32] sm:$0xff]
        %v698 = vld [vmem:[#allocation3 + $0x3a] sm:$0xff]
        %v699 = vld [vmem:[#allocation3 + $0x4a] sm:$0xff]
        %v700 = vld [vmem:[#allocation3 + $0x52] sm:$0xff]
        %v701 = vmax.f32 %v685, %v693
        %v702 = vmax.f32 %v686, %v694
        %v703 = vmax.f32 %v687, %v695
        %v704 = vmax.f32 %v688, %v696
        %v705 = vmax.f32 %v689, %v697
        %v706 = vmax.f32 %v690, %v698
        %v707 = vmax.f32 %v691, %v699
        %v708 = vmax.f32 %v692, %v700
        %v709 = vld [vmem:[#allocation3 + $0x3] sm:$0xff]
        %v710 = vld [vmem:[#allocation3 + $0xb] sm:$0xff]
        %v711 = vld [vmem:[#allocation3 + $0x1b] sm:$0xff]
        %v712 = vld [vmem:[#allocation3 + $0x23] sm:$0xff]
        %v713 = vld [vmem:[#allocation3 + $0x33] sm:$0xff]
        %v714 = vld [vmem:[#allocation3 + $0x3b] sm:$0xff]
        %v715 = vld [vmem:[#allocation3 + $0x4b] sm:$0xff]
        %v716 = vld [vmem:[#allocation3 + $0x53] sm:$0xff]
        %v717 = vmax.f32 %v701, %v709
        %v718 = vmax.f32 %v702, %v710
        %v719 = vmax.f32 %v703, %v711
        %v720 = vmax.f32 %v704, %v712
        %v721 = vmax.f32 %v705, %v713
        %v722 = vmax.f32 %v706, %v714
        %v723 = vmax.f32 %v707, %v715
        %v724 = vmax.f32 %v708, %v716
        %v725 = vld [vmem:[#allocation3 + $0x4] sm:$0xff]
        %v726 = vld [vmem:[#allocation3 + $0xc] sm:$0xff]
        %v727 = vld [vmem:[#allocation3 + $0x1c] sm:$0xff]
        %v728 = vld [vmem:[#allocation3 + $0x24] sm:$0xff]
        %v729 = vld [vmem:[#allocation3 + $0x34] sm:$0xff]
        %v730 = vld [vmem:[#allocation3 + $0x3c] sm:$0xff]
        %v731 = vld [vmem:[#allocation3 + $0x4c] sm:$0xff]
        %v732 = vld [vmem:[#allocation3 + $0x54] sm:$0xff]
        %v733 = vmax.f32 %v717, %v725
        %v734 = vmax.f32 %v718, %v726
        %v735 = vmax.f32 %v719, %v727
        %v736 = vmax.f32 %v720, %v728
        %v737 = vmax.f32 %v721, %v729
        %v738 = vmax.f32 %v722, %v730
        %v739 = vmax.f32 %v723, %v731
        %v740 = vmax.f32 %v724, %v732
        %s741 = scalar_lea.vmem %s155, 64 [#allocation7]
        %742 = vst.msk [vmem:[%s741] sm:$0xff] %vm167, %v733
        %743 = vst.msk [vmem:[%s741 + $0x8] sm:$0xff] %vm167, %v734
        %744 = vst.msk [vmem:[%s741 + $0x10] sm:$0xff] %vm167, %v735
        %745 = vst.msk [vmem:[%s741 + $0x18] sm:$0xff] %vm167, %v736
        %746 = vst.msk [vmem:[%s741 + $0x20] sm:$0xff] %vm167, %v737
        %747 = vst.msk [vmem:[%s741 + $0x28] sm:$0xff] %vm167, %v738
        %748 = vst.msk [vmem:[%s741 + $0x30] sm:$0xff] %vm167, %v739
        %749 = vst.msk [vmem:[%s741 + $0x38] sm:$0xff] %vm167, %v740
        %758 = vrot.lane.b32.xlu0 %v733, 2
        %v759 = vpop.permute.xlu0 %758
        %760 = vrot.lane.b32.xlu0 %v734, 2
        %v761 = vpop.permute.xlu0 %760
        %762 = vrot.lane.b32.xlu0 %v735, 2
        %v763 = vpop.permute.xlu0 %762
        %764 = vrot.lane.b32.xlu0 %v736, 2
        %v765 = vpop.permute.xlu0 %764
        %766 = vrot.lane.b32.xlu0 %v737, 2
        %v767 = vpop.permute.xlu0 %766
        %768 = vrot.lane.b32.xlu0 %v738, 2
        %v769 = vpop.permute.xlu0 %768
        %770 = vrot.lane.b32.xlu0 %v739, 2
        %v771 = vpop.permute.xlu0 %770
        %772 = vrot.lane.b32.xlu0 %v740, 2
        %v773 = vpop.permute.xlu0 %772
        %782 = vst.msk [vmem:[#allocation2] sm:$0xff] %vm235, %v759
        %783 = vst.msk [vmem:[#allocation2 + $0x8] sm:$0xff] %vm235, %v761
        %784 = vst.msk [vmem:[#allocation2 + $0x10] sm:$0xff] %vm235, %v763
        %785 = vst.msk [vmem:[#allocation2 + $0x18] sm:$0xff] %vm235, %v765
        %786 = vst.msk [vmem:[#allocation2 + $0x20] sm:$0xff] %vm235, %v767
        %787 = vst.msk [vmem:[#allocation2 + $0x28] sm:$0xff] %vm235, %v769
        %788 = vst.msk [vmem:[#allocation2 + $0x30] sm:$0xff] %vm235, %v771
        %789 = vst.msk [vmem:[#allocation2 + $0x38] sm:$0xff] %vm235, %v773
        %v790 = vld [vmem:[#allocation2] sm:$0xff]
        %v791 = vld [vmem:[#allocation2 + $0x8] sm:$0xff]
        %v792 = vld [vmem:[#allocation2 + $0x10] sm:$0xff]
        %v793 = vld [vmem:[#allocation2 + $0x18] sm:$0xff]
        %v794 = vld [vmem:[#allocation2 + $0x20] sm:$0xff]
        %v795 = vld [vmem:[#allocation2 + $0x28] sm:$0xff]
        %v796 = vld [vmem:[#allocation2 + $0x30] sm:$0xff]
        %v797 = vld [vmem:[#allocation2 + $0x38] sm:$0xff]
        %806 = vrot.lane.b32.xlu0 %v790, 127
        %v807 = vpop.permute.xlu0 %806
        %808 = vrot.lane.b32.xlu0 %v791, 127
        %v809 = vpop.permute.xlu0 %808
        %810 = vrot.lane.b32.xlu0 %v792, 127
        %v811 = vpop.permute.xlu0 %810
        %812 = vrot.lane.b32.xlu0 %v793, 127
        %v813 = vpop.permute.xlu0 %812
        %814 = vrot.lane.b32.xlu0 %v794, 127
        %v815 = vpop.permute.xlu0 %814
        %816 = vrot.lane.b32.xlu0 %v795, 127
        %v817 = vpop.permute.xlu0 %816
        %818 = vrot.lane.b32.xlu0 %v796, 127
        %v819 = vpop.permute.xlu0 %818
        %820 = vrot.lane.b32.xlu0 %v797, 127
        %v821 = vpop.permute.xlu0 %820
        %v830 = vmax.f32 %v790, %v807
        %v831 = vmax.f32 %v791, %v809
        %v832 = vmax.f32 %v792, %v811
        %v833 = vmax.f32 %v793, %v813
        %v834 = vmax.f32 %v794, %v815
        %v835 = vmax.f32 %v795, %v817
        %v836 = vmax.f32 %v796, %v819
        %v837 = vmax.f32 %v797, %v821
        %838 = vrot.lane.b32.xlu0 %v790, 126
        %v839 = vpop.permute.xlu0 %838
        %840 = vrot.lane.b32.xlu0 %v791, 126
        %v841 = vpop.permute.xlu0 %840
        %842 = vrot.lane.b32.xlu0 %v792, 126
        %v843 = vpop.permute.xlu0 %842
        %844 = vrot.lane.b32.xlu0 %v793, 126
        %v845 = vpop.permute.xlu0 %844
        %846 = vrot.lane.b32.xlu0 %v794, 126
        %v847 = vpop.permute.xlu0 %846
        %848 = vrot.lane.b32.xlu0 %v795, 126
        %v849 = vpop.permute.xlu0 %848
        %850 = vrot.lane.b32.xlu0 %v796, 126
        %v851 = vpop.permute.xlu0 %850
        %852 = vrot.lane.b32.xlu0 %v797, 126
        %v853 = vpop.permute.xlu0 %852
        %v862 = vmax.f32 %v830, %v839
        %v863 = vmax.f32 %v831, %v841
        %v864 = vmax.f32 %v832, %v843
        %v865 = vmax.f32 %v833, %v845
        %v866 = vmax.f32 %v834, %v847
        %v867 = vmax.f32 %v835, %v849
        %v868 = vmax.f32 %v836, %v851
        %v869 = vmax.f32 %v837, %v853
        %870 = vrot.lane.b32.xlu0 %v790, 125
        %v871 = vpop.permute.xlu0 %870
        %872 = vrot.lane.b32.xlu0 %v791, 125
        %v873 = vpop.permute.xlu0 %872
        %874 = vrot.lane.b32.xlu0 %v792, 125
        %v875 = vpop.permute.xlu0 %874
        %876 = vrot.lane.b32.xlu0 %v793, 125
        %v877 = vpop.permute.xlu0 %876
        %878 = vrot.lane.b32.xlu0 %v794, 125
        %v879 = vpop.permute.xlu0 %878
        %880 = vrot.lane.b32.xlu0 %v795, 125
        %v881 = vpop.permute.xlu0 %880
        %882 = vrot.lane.b32.xlu0 %v796, 125
        %v883 = vpop.permute.xlu0 %882
        %884 = vrot.lane.b32.xlu0 %v797, 125
        %v885 = vpop.permute.xlu0 %884
        %v894 = vmax.f32 %v862, %v871
        %v895 = vmax.f32 %v863, %v873
        %v896 = vmax.f32 %v864, %v875
        %v897 = vmax.f32 %v865, %v877
        %v898 = vmax.f32 %v866, %v879
        %v899 = vmax.f32 %v867, %v881
        %v900 = vmax.f32 %v868, %v883
        %v901 = vmax.f32 %v869, %v885
        %902 = vrot.lane.b32.xlu0 %v790, 124
        %v903 = vpop.permute.xlu0 %902
        %904 = vrot.lane.b32.xlu0 %v791, 124
        %v905 = vpop.permute.xlu0 %904
        %906 = vrot.lane.b32.xlu0 %v792, 124
        %v907 = vpop.permute.xlu0 %906
        %908 = vrot.lane.b32.xlu0 %v793, 124
        %v909 = vpop.permute.xlu0 %908
        %910 = vrot.lane.b32.xlu0 %v794, 124
        %v911 = vpop.permute.xlu0 %910
        %912 = vrot.lane.b32.xlu0 %v795, 124
        %v913 = vpop.permute.xlu0 %912
        %914 = vrot.lane.b32.xlu0 %v796, 124
        %v915 = vpop.permute.xlu0 %914
        %916 = vrot.lane.b32.xlu0 %v797, 124
        %v917 = vpop.permute.xlu0 %916
        %v926 = vmax.f32 %v894, %v903
        %v927 = vmax.f32 %v895, %v905
        %v928 = vmax.f32 %v896, %v907
        %v929 = vmax.f32 %v897, %v909
        %v930 = vmax.f32 %v898, %v911
        %v931 = vmax.f32 %v899, %v913
        %v932 = vmax.f32 %v900, %v915
        %v933 = vmax.f32 %v901, %v917
        %934 = vst.msk [vmem:[#allocation3 + $0x2] sm:$0xff] %vm167, %v926
        %935 = vst.msk [vmem:[#allocation3 + $0xa] sm:$0xff] %vm167, %v927
        %936 = vst.msk [vmem:[#allocation3 + $0x1a] sm:$0xff] %vm167, %v928
        %937 = vst.msk [vmem:[#allocation3 + $0x22] sm:$0xff] %vm167, %v929
        %938 = vst.msk [vmem:[#allocation3 + $0x32] sm:$0xff] %vm167, %v930
        %939 = vst.msk [vmem:[#allocation3 + $0x3a] sm:$0xff] %vm167, %v931
        %940 = vst.msk [vmem:[#allocation3 + $0x4a] sm:$0xff] %vm167, %v932
        %941 = vst.msk [vmem:[#allocation3 + $0x52] sm:$0xff] %vm167, %v933
        %v942 = vld [vmem:[#allocation3] sm:$0xff]
        %v943 = vld [vmem:[#allocation3 + $0x8] sm:$0xff]
        %v944 = vld [vmem:[#allocation3 + $0x18] sm:$0xff]
        %v945 = vld [vmem:[#allocation3 + $0x20] sm:$0xff]
        %v946 = vld [vmem:[#allocation3 + $0x30] sm:$0xff]
        %v947 = vld [vmem:[#allocation3 + $0x38] sm:$0xff]
        %v948 = vld [vmem:[#allocation3 + $0x48] sm:$0xff]
        %v949 = vld [vmem:[#allocation3 + $0x50] sm:$0xff]
        %v950 = vld [vmem:[#allocation3 + $0x1] sm:$0xff]
        %v951 = vld [vmem:[#allocation3 + $0x9] sm:$0xff]
        %v952 = vld [vmem:[#allocation3 + $0x19] sm:$0xff]
        %v953 = vld [vmem:[#allocation3 + $0x21] sm:$0xff]
        %v954 = vld [vmem:[#allocation3 + $0x31] sm:$0xff]
        %v955 = vld [vmem:[#allocation3 + $0x39] sm:$0xff]
        %v956 = vld [vmem:[#allocation3 + $0x49] sm:$0xff]
        %v957 = vld [vmem:[#allocation3 + $0x51] sm:$0xff]
        %v958 = vmax.f32 %v942, %v950
        %v959 = vmax.f32 %v943, %v951
        %v960 = vmax.f32 %v944, %v952
        %v961 = vmax.f32 %v945, %v953
        %v962 = vmax.f32 %v946, %v954
        %v963 = vmax.f32 %v947, %v955
        %v964 = vmax.f32 %v948, %v956
        %v965 = vmax.f32 %v949, %v957
        %v966 = vld [vmem:[#allocation3 + $0x2] sm:$0xff]
        %v967 = vld [vmem:[#allocation3 + $0xa] sm:$0xff]
        %v968 = vld [vmem:[#allocation3 + $0x1a] sm:$0xff]
        %v969 = vld [vmem:[#allocation3 + $0x22] sm:$0xff]
        %v970 = vld [vmem:[#allocation3 + $0x32] sm:$0xff]
        %v971 = vld [vmem:[#allocation3 + $0x3a] sm:$0xff]
        %v972 = vld [vmem:[#allocation3 + $0x4a] sm:$0xff]
        %v973 = vld [vmem:[#allocation3 + $0x52] sm:$0xff]
        %v974 = vmax.f32 %v958, %v966
        %v975 = vmax.f32 %v959, %v967
        %v976 = vmax.f32 %v960, %v968
        %v977 = vmax.f32 %v961, %v969
        %v978 = vmax.f32 %v962, %v970
        %v979 = vmax.f32 %v963, %v971
        %v980 = vmax.f32 %v964, %v972
        %v981 = vmax.f32 %v965, %v973
        %v982 = vld [vmem:[#allocation3 + $0x3] sm:$0xff]
        %v983 = vld [vmem:[#allocation3 + $0xb] sm:$0xff]
        %v984 = vld [vmem:[#allocation3 + $0x1b] sm:$0xff]
        %v985 = vld [vmem:[#allocation3 + $0x23] sm:$0xff]
        %v986 = vld [vmem:[#allocation3 + $0x33] sm:$0xff]
        %v987 = vld [vmem:[#allocation3 + $0x3b] sm:$0xff]
        %v988 = vld [vmem:[#allocation3 + $0x4b] sm:$0xff]
        %v989 = vld [vmem:[#allocation3 + $0x53] sm:$0xff]
        %v990 = vmax.f32 %v974, %v982
        %v991 = vmax.f32 %v975, %v983
        %v992 = vmax.f32 %v976, %v984
        %v993 = vmax.f32 %v977, %v985
        %v994 = vmax.f32 %v978, %v986
        %v995 = vmax.f32 %v979, %v987
        %v996 = vmax.f32 %v980, %v988
        %v997 = vmax.f32 %v981, %v989
        %v998 = vld [vmem:[#allocation3 + $0x4] sm:$0xff]
        %v999 = vld [vmem:[#allocation3 + $0xc] sm:$0xff]
        %v1000 = vld [vmem:[#allocation3 + $0x1c] sm:$0xff]
        %v1001 = vld [vmem:[#allocation3 + $0x24] sm:$0xff]
        %v1002 = vld [vmem:[#allocation3 + $0x34] sm:$0xff]
        %v1003 = vld [vmem:[#allocation3 + $0x3c] sm:$0xff]
        %v1004 = vld [vmem:[#allocation3 + $0x4c] sm:$0xff]
        %v1005 = vld [vmem:[#allocation3 + $0x54] sm:$0xff]
        %v1006 = vmax.f32 %v990, %v998
        %v1007 = vmax.f32 %v991, %v999
        %v1008 = vmax.f32 %v992, %v1000
        %v1009 = vmax.f32 %v993, %v1001
        %v1010 = vmax.f32 %v994, %v1002
        %v1011 = vmax.f32 %v995, %v1003
        %v1012 = vmax.f32 %v996, %v1004
        %v1013 = vmax.f32 %v997, %v1005
        %1014 = vst.msk [vmem:[%s155] sm:$0xff] %vm167, %v1006
        %1015 = vst.msk [vmem:[%s155 + $0x8] sm:$0xff] %vm167, %v1007
        %1016 = vst.msk [vmem:[%s155 + $0x10] sm:$0xff] %vm167, %v1008
        %1017 = vst.msk [vmem:[%s155 + $0x18] sm:$0xff] %vm167, %v1009
        %1018 = vst.msk [vmem:[%s155 + $0x20] sm:$0xff] %vm167, %v1010
        %1019 = vst.msk [vmem:[%s155 + $0x28] sm:$0xff] %vm167, %v1011
        %1020 = vst.msk [vmem:[%s155 + $0x30] sm:$0xff] %vm167, %v1012
        %1021 = vst.msk [vmem:[%s155 + $0x38] sm:$0xff] %vm167, %v1013
        %s1022 = sand.u32 %s68, 1
        %s1023 = scalar_lea.sflag [#allocation6], %s1022
        %s1024 = sand.u32 %s68, 1
        %s1025 = smul.addr %s1024, 256
        %s1026 = scalar_lea.vmem [#allocation7], %s1025
        // Predicated region
        $region29: #{tpu_custom_call.1} parent=23 // pred_check
          %p1027 = pneg %p78
        $region30: #{tpu_custom_call.1} parent=23 // pred_check_branch
          %1029 = sbr.rel (%p1027) target = $region32
        $region31: #{tpu_custom_call.1} parent=23 // pred_region
          %s1030 = smul.u32 4, %s23
          %1032 = vsyncadd %s1023, 0
          %s1033 = smul.addr %s1030, 2
          %s1034 = smul.addr %s22, 32
          %s1035 = sadd.s32 %s1033, %s1034
          %s1036 = smul.addr %s1035, 8
          %s1037 = scalar_lea.hbm %s1, %s1036
          %s1038 = sshll.u32 %s1026, 4
          %s1039 = int_to_ptr.vmem [resolvable:$true] %s1038
          %s1040 = sshll.u32 %s1037, 4
          %s1041 = int_to_ptr.hbm [resolvable:$true] %s1040
          %1046 = dma.vmem_to_hbm [thread:$0]  %s1039, 4096, %s1041, %s1023, 128, 128, 8
        $region32: #{tpu_custom_call.1} parent=23 // pred_fallthru
          _
      $region24: #{tpu_custom_call.1} parent=5 // pred_fallthru
        _
      %p1047 = scmp.le.s32.totalorder 2, %s13
      // Predicated region
      $region33: #{tpu_custom_call.1} parent=5 // pred_check
        %p1048 = pneg %p1047
      $region34: #{tpu_custom_call.1} parent=5 // pred_check_branch
        %1050 = sbr.rel (%p1048) target = $region36
      $region35: #{tpu_custom_call.1} parent=5 // pred_region
        %s1051 = ssub.s32 %s13, 2
        // Predicated region
        $region37: #{tpu_custom_call.1} parent=35 // pred_check
          %p1052 = pneg %p84
        $region38: #{tpu_custom_call.1} parent=35 // pred_check_branch
          %1054 = sbr.rel (%p1052) target = $region40
        $region39: #{tpu_custom_call.1} parent=35 // pred_region
          %s1055 = sand.u32 %s69, 1
          %s1056 = scalar_lea.sflag [#allocation6], %s1055
          %s1057 = sand.u32 %s69, 1
          %s1058 = smul.addr %s1057, 256
          %s1059 = scalar_lea.vmem [#allocation7], %s1058
          %1061 = dma.done %s1056, 4096
        $region40: #{tpu_custom_call.1} parent=35 // pred_fallthru
          _
      $region36: #{tpu_custom_call.1} parent=5 // pred_fallthru
        _
    $region6: #{tpu_custom_call.1} parent=1 // loop_footer
      %s17 = sadd.s32 1, %s13
    $region7: #{tpu_custom_call.1} parent=1 // loop_footer_branch
      %12 = sbr.rel target = $region3
    $region8: #{tpu_custom_call.1} parent=1 // loop_exit
      _
    %1062 = vsyncpa [#allocation5], 1
    %s1063 = scalar_lea.sflag [#allocation5], 1
    %1064 = vsyncpa %s1063, 1
    %1065 = vsyncpa [#allocation6], 1
    %s1066 = scalar_lea.sflag [#allocation6], 1
    %1067 = vsyncpa %s1066, 1

</llo_original>
